<compile_context>
chip_gen: v6e
topology: v6e:2x2x1
jax: 0.10.0
libtpu: 0.0.40
codegen_flags: <defaults>
</compile_context>

<pallas_src>
import functools

import jax
import jax.numpy as jnp
from jax.experimental import pallas as pl
from jax.experimental.pallas import tpu as pltpu

BN_EPS = 1e-5
_VMEM_LIMIT_BYTES = 32 * 1024 * 1024   # safe on v5e/v6e/v7x (<= scoped/physical)


def _pick_tiles(n_rows, length):
    """Biggest simple tiles that keep double-buffered blocks well under VMEM."""
    tile_r = n_rows if n_rows <= 256 else 256       # full rows or multiple of 8
    tile_l = length if length <= 2048 else 2048     # full L or multiple of 128
    return tile_r, tile_l


# ----------------------------------------------------------------------------
# Kernel 1: streaming per-row sum over L.
# Grid: (n_shards, n_row_tiles, tiles_per_shard)
#        = ("parallel", "parallel", "arbitrary")
# ----------------------------------------------------------------------------
def _rowsum_kernel(x_ref, psum_ref, acc_ref, *, total_len, tile_l,
                   tiles_per_shard, need_mask):
    l = pl.program_id(2)

    @pl.when(l == 0)
    def _():
        acc_ref[...] = jnp.zeros_like(acc_ref)

    x = x_ref[...].astype(jnp.float32)
    if need_mask:
        # Logical (unclamped) tile index along L.  Tiles past the end of L
        # (clamped onto the last real tile by the index map) are fully masked
        # out and the tail tile is masked to its valid lanes.
        g = pl.program_id(0) * tiles_per_shard + l
        off = g * tile_l
        lane = jax.lax.broadcasted_iota(jnp.int32, x_ref.shape, 1)
        x = jnp.where((lane + off) < total_len, x, 0.0)

    # Lane-wide accumulate (VPU adds hide under the DMA); the cross-lane XLU
    # reduce happens once, at the end of the shard.
    acc_ref[...] += x

    @pl.when(l == pl.num_programs(2) - 1)
    def _():
        psum_ref[...] = jnp.sum(acc_ref[...], axis=1, keepdims=True)[None]


# ----------------------------------------------------------------------------
# Kernel 2: elementwise ACON over rows = N*C, lanes = L.
#   out = s * sigmoid(beta * s) + b*x,   s = (p1 - p2)*x,  b = p2  (per row).
# ----------------------------------------------------------------------------
def _acon_kernel(x_ref, a_ref, b_ref, beta_ref, o_ref):
    x = x_ref[...]                       # (tile_r, tile_l)
    a = a_ref[...]                       # (tile_r, 1)
    b = b_ref[...]                       # (tile_r, 1)
    beta = beta_ref[...]                 # (tile_r, 1)
    s = a * x
    o_ref[...] = (s * jax.nn.sigmoid(beta * s) + b * x).astype(o_ref.dtype)


def meta_aconc(x, params, *, tile_l=None, tile_rows=None, donate_x=False):
    """MetaAconC forward.  x: (N, C, L) float32."""
    N, C, L = x.shape
    w1, b1, g1, be1, w2, b2, g2, be2, p1, p2 = params
    NC = N * C

    auto_r, auto_l = _pick_tiles(NC, L)
    tr = tile_rows if tile_rows is not None else auto_r
    tl = tile_l if tile_l is not None else auto_l

    x_rows = x.reshape(NC, L)

    n_l = pl.cdiv(L, tl)
    n_r = pl.cdiv(NC, tr)

    # ------------------------- pass 1: row sums over L -----------------------
    n_shards = 2 if n_l >= 2 else 1
    tps = pl.cdiv(n_l, n_shards)                    # tiles per shard
    exact_tiles = (n_shards * tps == n_l)           # no clamped duplicate tiles
    need_mask = (not exact_tiles) or (L % tl != 0)  # ragged tail lanes present

    def x_red_map(s, r, l):
        g = s * tps + l
        if not exact_tiles:
            # Clamp onto the last real tile; the kernel masks clamped re-reads.
            g = jnp.minimum(g, n_l - 1)
        return (r, g)

    psums = pl.pallas_call(
        functools.partial(_rowsum_kernel, total_len=L, tile_l=tl,
                          tiles_per_shard=tps, need_mask=need_mask),
        out_shape=jax.ShapeDtypeStruct((n_shards, NC, 1), jnp.float32),
        grid_spec=pltpu.PrefetchScalarGridSpec(
            num_scalar_prefetch=0,
            grid=(n_shards, n_r, tps),
            in_specs=[pl.BlockSpec((tr, tl), x_red_map)],
            out_specs=pl.BlockSpec((1, tr, 1), lambda s, r, l: (s, r, 0)),
            scratch_shapes=[pltpu.VMEM((tr, tl), jnp.float32)],
        ),
        compiler_params=pltpu.CompilerParams(
            dimension_semantics=("parallel", "parallel", "arbitrary"),
            vmem_limit_bytes=_VMEM_LIMIT_BYTES),
    )(x_rows)

    # -------- beta network (tiny (N,C)->(N,C) MLP + BN): plain JAX glue ------
    # Far below MXU/kernel granularity; keeping it out of the kernel keeps
    # kernel 1 a pure streaming reduction and drops 8 tiny param arrays from
    # the pipelined input path.
    mean = psums.sum(axis=0)[:, 0].reshape(N, C) / L                  # (N, C)
    h = mean @ w1.T + b1                                              # fc1
    mu1 = jnp.mean(h, axis=0, keepdims=True)
    v1 = jnp.mean((h - mu1) ** 2, axis=0, keepdims=True)
    h = (h - mu1) * jax.lax.rsqrt(v1 + BN_EPS) * g1 + be1             # bn1
    h2 = h @ w2.T + b2                                                # fc2
    mu2 = jnp.mean(h2, axis=0, keepdims=True)
    v2 = jnp.mean((h2 - mu2) ** 2, axis=0, keepdims=True)
    h2 = (h2 - mu2) * jax.lax.rsqrt(v2 + BN_EPS) * g2 + be2           # bn2
    beta = jax.nn.sigmoid(h2)                                         # (N, C)

    # Per-row coefficients for the elementwise pass.
    a_rows = jnp.broadcast_to((p1 - p2).reshape(1, C), (N, C)).reshape(NC, 1)
    b_rows = jnp.broadcast_to(p2.reshape(1, C), (N, C)).reshape(NC, 1)
    beta_rows = beta.reshape(NC, 1)

    # ------------------------- pass 2: elementwise ACON ----------------------
    extra = {"input_output_aliases": {0: 0}} if donate_x else {}
    out_rows = pl.pallas_call(
        _acon_kernel,
        out_shape=jax.ShapeDtypeStruct((NC, L), x.dtype),
        grid_spec=pltpu.PrefetchScalarGridSpec(
            num_scalar_prefetch=0,
            grid=(n_r, n_l),
            in_specs=[
                pl.BlockSpec((tr, tl), lambda r, l: (r, l)),
                pl.BlockSpec((tr, 1), lambda r, l: (r, 0)),   # fetched once / row tile
                pl.BlockSpec((tr, 1), lambda r, l: (r, 0)),
                pl.BlockSpec((tr, 1), lambda r, l: (r, 0)),
            ],
            out_specs=pl.BlockSpec((tr, tl), lambda r, l: (r, l)),
        ),
        compiler_params=pltpu.CompilerParams(
            dimension_semantics=("parallel", "parallel"),
            vmem_limit_bytes=_VMEM_LIMIT_BYTES),
        **extra,
    )(x_rows, a_rows, b_rows, beta_rows)

    # TODO(synk): a fully fused single-pass variant (whole x resident in VMEM,
    # beta MLP computed in-kernel) would save one HBM read of x when N*C*L
    # fits the VMEM budget; the general case needs two passes because beta
    # depends on the full batch mean of x.
    return out_rows.reshape(N, C, L)


# ----------------------------------------------------------------------------
# Pure-JAX reference for verification.
# ----------------------------------------------------------------------------
def meta_aconc_ref(x, params):
    w1, b1, g1, be1, w2, b2, g2, be2, p1, p2 = params
    m = jnp.mean(x, axis=2, keepdims=True)                               # (N, C, 1)
    h = jnp.einsum('rc,ncl->nrl', w1, m) + b1[None, :, None]             # fc1
    mu1 = jnp.mean(h, axis=(0, 2), keepdims=True)
    v1 = jnp.mean((h - mu1) ** 2, axis=(0, 2), keepdims=True)
    h = (h - mu1) / jnp.sqrt(v1 + BN_EPS) * g1[None, :, None] + be1[None, :, None]
    h2 = jnp.einsum('cr,nrl->ncl', w2, h) + b2[None, :, None]            # fc2
    mu2 = jnp.mean(h2, axis=(0, 2), keepdims=True)
    v2 = jnp.mean((h2 - mu2) ** 2, axis=(0, 2), keepdims=True)
    h2 = (h2 - mu2) / jnp.sqrt(v2 + BN_EPS) * g2[None, :, None] + be2[None, :, None]
    beta = jax.nn.sigmoid(h2)                                            # (N, C, 1)
    p1b = p1.reshape(1, -1, 1)
    p2b = p2.reshape(1, -1, 1)
    dpx = (p1b - p2b) * x
    return dpx * jax.nn.sigmoid(beta * dpx) + p2b * x


if __name__ == "__main__":
    N, width, r = 2, 4, 16
    R = max(r, width // r)          # hidden width of the beta network

    key = jax.random.PRNGKey(0)
    ks = jax.random.split(key, 7)

    # Deterministic synthetic parameters (shapes from the module's __init__).
    w1 = jax.random.normal(ks[1], (R, width), jnp.float32) * 0.5   # fc1 weight (R,C,1)->(R,C)
    b1 = jax.random.normal(ks[2], (R,), jnp.float32) * 0.1
    w2 = jax.random.normal(ks[3], (width, R), jnp.float32) * 0.5   # fc2 weight (C,R,1)->(C,R)
    b2 = jax.random.normal(ks[4], (width,), jnp.float32) * 0.1
    g1 = jnp.ones((R,), jnp.float32)        # bn1 weight (default init)
    be1 = jnp.zeros((R,), jnp.float32)      # bn1 bias
    g2 = jnp.ones((width,), jnp.float32)    # bn2 weight
    be2 = jnp.zeros((width,), jnp.float32)  # bn2 bias
    p12 = jax.random.normal(ks[5], (2, width), jnp.float32)        # p1, p2 (1,C,1) flattened
    params = (w1, b1, g1, be1, w2, b2, g2, be2, p12[0], p12[1])

    fwd = jax.jit(meta_aconc, static_argnames=("tile_l", "tile_rows", "donate_x"))

    # Case 1: auto tiling (single full-L lane tile, full rows) — exercises the
    # statically mask-free fast path.
    x1 = jax.random.normal(ks[0], (N, width, 256), jnp.float32)
    out1 = jax.block_until_ready(fwd(x1, params))
    ref1 = meta_aconc_ref(x1, params)
    assert out1.shape == x1.shape and out1.dtype == x1.dtype
    err1 = float(jnp.max(jnp.abs(out1 - ref1)))
    assert err1 < 1e-3, f"case1 kernel/reference mismatch, max abs err = {err1}"

    # Case 2: ragged L with forced small tiles — exercises the cdiv grid,
    # tail-lane masking, clamped duplicate tiles and the 2-shard parallel
    # reduction path.
    x2 = jax.random.normal(ks[6], (N, width, 320), jnp.float32)
    out2 = jax.block_until_ready(fwd(x2, params, tile_l=128))
    ref2 = meta_aconc_ref(x2, params)
    err2 = float(jnp.max(jnp.abs(out2 - ref2)))
    assert out2.shape == x2.shape and err2 < 1e-3, \
        f"case2 kernel/reference mismatch, max abs err = {err2}"

    print("KERNEL_OK")
</pallas_src>

<mosaic_0001>
module attributes {stable_mosaic.version = 11 : i64} {
  func.func @_rowsum_kernel(%arg0: i32, %arg1: i32, %arg2: i32, %arg3: memref<8x256xf32, #tpu.memory_space<vmem>>, %arg4: memref<1x8x1xf32, #tpu.memory_space<vmem>>, %arg5: memref<8x256xf32, #tpu.memory_space<vmem>>) attributes {dimension_semantics = [#tpu.dimension_semantics<parallel>, #tpu.dimension_semantics<parallel>, #tpu.dimension_semantics<arbitrary>], iteration_bounds = array<i64: 1, 1, 1>, scalar_prefetch = 0 : i64, scratch_operands = 1 : i64, tpu.core_type = #tpu.core_type<tc>, window_params = [{transform_indices = @transform_0, window_bounds = array<i64: 8, 256>}, {transform_indices = @transform_1, window_bounds = array<i64: 1, 8, 1>}]} {
    %c0_i32 = arith.constant 0 : i32
    %0 = arith.cmpi eq, %arg2, %c0_i32 : i32
    %1 = arith.extui %0 : i1 to i32
    %c0_i32_0 = arith.constant 0 : i32
    %2 = arith.cmpi ne, %1, %c0_i32_0 : i32
    scf.if %2 {
      %cst = arith.constant 0.000000e+00 : f32
      %10 = vector.broadcast %cst : f32 to vector<8x256xf32>
      %c0_8 = arith.constant 0 : index
      %c0_9 = arith.constant 0 : index
      %11 = vector.load %arg5[%c0_8, %c0_9] : memref<8x256xf32, #tpu.memory_space<vmem>>, vector<8x256xf32>
      tpu.vector_store %arg5[%c0_8, %c0_9], %10 {strides = array<i32>} : memref<8x256xf32, #tpu.memory_space<vmem>>, vector<8x256xf32>,
    } else {
    }
    %c0 = arith.constant 0 : index
    %c0_1 = arith.constant 0 : index
    %3 = vector.load %arg3[%c0, %c0_1] : memref<8x256xf32, #tpu.memory_space<vmem>>, vector<8x256xf32>
    %c0_2 = arith.constant 0 : index
    %c0_3 = arith.constant 0 : index
    %4 = vector.load %arg5[%c0_2, %c0_3] : memref<8x256xf32, #tpu.memory_space<vmem>>, vector<8x256xf32>
    %5 = arith.addf %4, %3 : vector<8x256xf32>
    %c0_4 = arith.constant 0 : index
    %c0_5 = arith.constant 0 : index
    %6 = vector.load %arg5[%c0_4, %c0_5] : memref<8x256xf32, #tpu.memory_space<vmem>>, vector<8x256xf32>
    tpu.vector_store %arg5[%c0_4, %c0_5], %5 {strides = array<i32>} : memref<8x256xf32, #tpu.memory_space<vmem>>, vector<8x256xf32>,
    %c0_i32_6 = arith.constant 0 : i32
    %7 = arith.cmpi eq, %arg2, %c0_i32_6 : i32
    %8 = arith.extui %7 : i1 to i32
    %c0_i32_7 = arith.constant 0 : i32
    %9 = arith.cmpi ne, %8, %c0_i32_7 : i32
    scf.if %9 {
      %c0_8 = arith.constant 0 : index
      %c0_9 = arith.constant 0 : index
      %10 = vector.load %arg5[%c0_8, %c0_9] : memref<8x256xf32, #tpu.memory_space<vmem>>, vector<8x256xf32>
      %cst = arith.constant dense<0.000000e+00> : vector<8xf32>
      %11 = vector.multi_reduction <add>, %10, %cst [1] : vector<8x256xf32> to vector<8xf32>
      %12 = vector.shape_cast %11 : vector<8xf32> to vector<8x1xf32>
      %13 = vector.shape_cast %12 : vector<8x1xf32> to vector<1x8x1xf32>
      %c0_10 = arith.constant 0 : index
      %c0_11 = arith.constant 0 : index
      %c0_12 = arith.constant 0 : index
      %14 = vector.load %arg4[%c0_10, %c0_11, %c0_12] : memref<1x8x1xf32, #tpu.memory_space<vmem>>, vector<1x8x1xf32>
      tpu.vector_store %arg4[%c0_10, %c0_11, %c0_12], %13 {strides = array<i32>} : memref<1x8x1xf32, #tpu.memory_space<vmem>>, vector<1x8x1xf32>,
    } else {
    }
    return
  }
  func.func @transform_0(%arg0: i32, %arg1: i32, %arg2: i32) -> (i32, i32) {
    %c1_i32 = arith.constant 1 : i32
    %0 = arith.muli %arg0, %c1_i32 : i32
    %1 = arith.addi %0, %arg2 : i32
    %c0_i32 = arith.constant 0 : i32
    return %arg1, %1 : i32, i32
  }
  func.func @transform_1(%arg0: i32, %arg1: i32, %arg2: i32) -> (i32, i32, i32) {
    %c0_i32 = arith.constant 0 : i32
    %c0_i32_0 = arith.constant 0 : i32
    return %arg0, %arg1, %c0_i32 : i32, i32, i32
  }
}

module attributes {stable_mosaic.version = 11 : i64} {
  func.func @_acon_kernel(%arg0: i32, %arg1: i32, %arg2: memref<8x256xf32, #tpu.memory_space<vmem>>, %arg3: memref<8x1xf32, #tpu.memory_space<vmem>>, %arg4: memref<8x1xf32, #tpu.memory_space<vmem>>, %arg5: memref<8x1xf32, #tpu.memory_space<vmem>>, %arg6: memref<8x256xf32, #tpu.memory_space<vmem>>) attributes {dimension_semantics = [#tpu.dimension_semantics<parallel>, #tpu.dimension_semantics<parallel>], iteration_bounds = array<i64: 1, 1>, scalar_prefetch = 0 : i64, scratch_operands = 0 : i64, tpu.core_type = #tpu.core_type<tc>, window_params = [{transform_indices = @transform_0, window_bounds = array<i64: 8, 256>}, {transform_indices = @transform_1, window_bounds = array<i64: 8, 1>}, {transform_indices = @transform_2, window_bounds = array<i64: 8, 1>}, {transform_indices = @transform_3, window_bounds = array<i64: 8, 1>}, {transform_indices = @transform_4, window_bounds = array<i64: 8, 256>}]} {
    %c0 = arith.constant 0 : index
    %c0_0 = arith.constant 0 : index
    %0 = vector.load %arg2[%c0, %c0_0] : memref<8x256xf32, #tpu.memory_space<vmem>>, vector<8x256xf32>
    %c0_1 = arith.constant 0 : index
    %c0_2 = arith.constant 0 : index
    %1 = vector.load %arg3[%c0_1, %c0_2] : memref<8x1xf32, #tpu.memory_space<vmem>>, vector<8x1xf32>
    %c0_3 = arith.constant 0 : index
    %c0_4 = arith.constant 0 : index
    %2 = vector.load %arg4[%c0_3, %c0_4] : memref<8x1xf32, #tpu.memory_space<vmem>>, vector<8x1xf32>
    %c0_5 = arith.constant 0 : index
    %c0_6 = arith.constant 0 : index
    %3 = vector.load %arg5[%c0_5, %c0_6] : memref<8x1xf32, #tpu.memory_space<vmem>>, vector<8x1xf32>
    %4 = vector.broadcast %1 : vector<8x1xf32> to vector<8x256xf32>
    %5 = arith.mulf %4, %0 : vector<8x256xf32>
    %6 = vector.broadcast %3 : vector<8x1xf32> to vector<8x256xf32>
    %7 = arith.mulf %6, %5 : vector<8x256xf32>
    %8 = arith.negf %7 : vector<8x256xf32>
    %9 = math.exp %8 : vector<8x256xf32>
    %cst = arith.constant 1.000000e+00 : f32
    %10 = vector.broadcast %cst : f32 to vector<8x256xf32>
    %11 = arith.addf %10, %9 : vector<8x256xf32>
    %12 = arith.divf %10, %11 : vector<8x256xf32>
    %13 = arith.mulf %5, %12 : vector<8x256xf32>
    %14 = vector.broadcast %2 : vector<8x1xf32> to vector<8x256xf32>
    %15 = arith.mulf %14, %0 : vector<8x256xf32>
    %16 = arith.addf %13, %15 : vector<8x256xf32>
    %c0_7 = arith.constant 0 : index
    %c0_8 = arith.constant 0 : index
    %17 = vector.load %arg6[%c0_7, %c0_8] : memref<8x256xf32, #tpu.memory_space<vmem>>, vector<8x256xf32>
    tpu.vector_store %arg6[%c0_7, %c0_8], %16 {strides = array<i32>} : memref<8x256xf32, #tpu.memory_space<vmem>>, vector<8x256xf32>,
    return
  }
  func.func @transform_0(%arg0: i32, %arg1: i32) -> (i32, i32) {
    %c0_i32 = arith.constant 0 : i32
    return %arg0, %arg1 : i32, i32
  }
  func.func @transform_1(%arg0: i32, %arg1: i32) -> (i32, i32) {
    %c0_i32 = arith.constant 0 : i32
    %c0_i32_0 = arith.constant 0 : i32
    return %arg0, %c0_i32 : i32, i32
  }
  func.func @transform_2(%arg0: i32, %arg1: i32) -> (i32, i32) {
    %c0_i32 = arith.constant 0 : i32
    %c0_i32_0 = arith.constant 0 : i32
    return %arg0, %c0_i32 : i32, i32
  }
  func.func @transform_3(%arg0: i32, %arg1: i32) -> (i32, i32) {
    %c0_i32 = arith.constant 0 : i32
    %c0_i32_0 = arith.constant 0 : i32
    return %arg0, %c0_i32 : i32, i32
  }
  func.func @transform_4(%arg0: i32, %arg1: i32) -> (i32, i32) {
    %c0_i32 = arith.constant 0 : i32
    return %arg0, %arg1 : i32, i32
  }
}

</mosaic_0001>

<llo_original>
// kernel: sub.33
$region0: #{sub.33}
  #allocation0 [shape = 's32[1]{0}', space=sflag, size = 0x4, scoped, tag = 'scoped memory for sub.33']
  %s0 = inlined_call_operand.vmem [shape: f32[4], index: 0, kind: input, shape index: {}]
  %s1 = inlined_call_operand.vmem [shape: f32[4], index: 1, kind: input, shape index: {}]
  %s2 = inlined_call_operand.vmem [shape: f32[4], index: 2, kind: output, shape index: {}]
  %v3 = vld [vmem:[%s0] sm:$0x1]
  %v4 = vld [vmem:[%s1] sm:$0x1]
  %5 = xla_tuple %v3, %v4
  %6 = xla_tuple %5
  %v7 = vsub.f32 %v3, %v4
  %8 = xla_tuple %v7
  %9 = vst [vmem:[%s2] sm:$0x1] %v7

// kernel: meta_aconc.2
$region0: #{meta_aconc.2}
  #allocation0 [shape = 'u32[]', space=smem, size = 0x4, offset = 0x4, fixed_abs, tag = 'smem constant byte address 0x4 - core index']
  #allocation1 [shape = 'u32[144,128]{1,0:T(1,128)}', space=vmem, size = 0x12000, scoped, tag = 'internal scratch']
  #allocation2 [shape = 'f32[8,256]{1,0:T(8,128)}', space=vmem, size = 0x2000, scoped, tag = 'scratch operand']
  %s0 = inlined_call_operand.vmem [shape: f32[8,256], index: 0, kind: input, shape index: {}]
  %s1 = inlined_call_operand.vmem [shape: f32[1,8,1], index: 1, kind: output, shape index: {}]
  %s2 = sld [smem:[#allocation0]]
  $region22: #{meta_aconc.2} parent=0
    _
  %s4 = ssub.s32 1, %s2
  %s5 = scalar_select 0, %s4, %s2
  // Predicated region
  $region2: #{meta_aconc.2} parent=0 // pred_check
    _
  $region3: #{meta_aconc.2} parent=0 // pred_check_branch
    %7 = sbr.rel (0) target = $region5
  $region4: #{meta_aconc.2} parent=0 // pred_region
    %s8 = sadd.s32 0, 0
    %s9 = smul.u32 2, %s8
    %p10 = scmp.lt.s32.totalorder %s9, 1
    %s11 = scalar_select %p10, %s9, 1
    %s12 = smul.addr %s11, 8
    %s13 = scalar_lea.vmem %s0, %s12
    %s14 = sadd.s32 0, 0
    %s15 = smul.u32 2, %s14
  $region5: #{meta_aconc.2} parent=0 // pred_fallthru
    _
  %s16 = sadd.s32 0, 0
  %s17 = smul.u32 2, %s16
  %p18 = scmp.lt.s32.totalorder %s17, 1
  %s19 = scalar_select %p18, %s17, 1
  %s20 = smul.addr %s19, 8
  %s21 = scalar_lea.vmem %s0, %s20
  %s22 = sadd.s32 0, 0
  %s23 = smul.u32 2, %s22
  %p24 = scmp.lt.s32.totalorder %s23, 1
  %s25 = scalar_select %p24, %s23, 1
  %s26 = smul.addr %s25, 8
  %s27 = scalar_lea.vmem %s0, %s26
  %s28 = sadd.s32 0, 0
  %s29 = smul.u32 2, %s28
  %p30 = scmp.eq.s32.totalorder 0, 0
  // Predicated region
  $region6: #{meta_aconc.2} parent=0 // pred_check
    %p31 = pneg %p30
  $region7: #{meta_aconc.2} parent=0 // pred_check_branch
    %33 = sbr.rel (%p31) target = $region9
  $region8: #{meta_aconc.2} parent=0 // pred_region
    %34 = vst [vmem:[#allocation2] sm:$0xff] 0.0
    %35 = vst [vmem:[#allocation2 + $0x8] sm:$0xff] 0.0
  $region9: #{meta_aconc.2} parent=0 // pred_fallthru
    _
  %v36 = vld [vmem:[%s27] sm:$0xff]
  %v37 = vld [vmem:[%s27 + $0x8] sm:$0xff]
  %v38 = vld [vmem:[#allocation2] sm:$0xff]
  %v39 = vld [vmem:[#allocation2 + $0x8] sm:$0xff]
  %v40 = vadd.f32 %v38, %v36
  %v41 = vadd.f32 %v39, %v37
  %42 = vst [vmem:[#allocation2] sm:$0xff] %v40
  %43 = vst [vmem:[#allocation2 + $0x8] sm:$0xff] %v41
  // Predicated region
  $region10: #{meta_aconc.2} parent=0 // pred_check
    %p44 = pneg %p30
  $region11: #{meta_aconc.2} parent=0 // pred_check_branch
    %46 = sbr.rel (%p44) target = $region13
  $region12: #{meta_aconc.2} parent=0 // pred_region
    %v47 = vld [vmem:[#allocation2] sm:$0xff]
    %v48 = vld [vmem:[#allocation2 + $0x8] sm:$0xff]
    %v49 = vadd.f32 %v47, %v48
    %50 = vadd.xlane.f32.xlu0 %v49
    %v51 = vpop.xlane.xlu0 %50
    %vm52 = vcmask 7168
    %53 = vst.msk [vmem:[%s1] sm:$0xff] %vm52, %v51
  $region13: #{meta_aconc.2} parent=0 // pred_fallthru
    _
  // Predicated region
  $region14: #{meta_aconc.2} parent=0 // pred_check
    _
  $region15: #{meta_aconc.2} parent=0 // pred_check_branch
    %55 = sbr.rel (0) target = $region17
  $region16: #{meta_aconc.2} parent=0 // pred_region
    _
  $region17: #{meta_aconc.2} parent=0 // pred_fallthru
    _
  // Predicated region
  $region18: #{meta_aconc.2} parent=0 // pred_check
    _
  $region19: #{meta_aconc.2} parent=0 // pred_check_branch
    %57 = sbr.rel (0) target = $region21
  $region20: #{meta_aconc.2} parent=0 // pred_region
    _
  $region21: #{meta_aconc.2} parent=0 // pred_fallthru
    _

// kernel: meta_aconc.3
$region0: #{meta_aconc.3}
  #allocation0 [shape = 'u32[]', space=smem, size = 0x4, offset = 0x4, fixed_abs, tag = 'smem constant byte address 0x4 - core index']
  #allocation1 [shape = 'u32[144,128]{1,0:T(1,128)}', space=vmem, size = 0x12000, scoped, tag = 'internal scratch']
  %s0 = inlined_call_operand.vmem [shape: f32[8,256], index: 0, kind: input, shape index: {}]
  %s1 = inlined_call_operand.vmem [shape: f32[8,1], index: 1, kind: input, shape index: {}]
  %s2 = inlined_call_operand.vmem [shape: f32[8,1], index: 2, kind: input, shape index: {}]
  %s3 = inlined_call_operand.vmem [shape: f32[8,1], index: 3, kind: input, shape index: {}]
  %s4 = inlined_call_operand.vmem [shape: f32[8,256], index: 4, kind: output, shape index: {}]
  %s5 = sld [smem:[#allocation0]]
  $region26: #{meta_aconc.3} parent=0
    _
  %s7 = ssub.s32 1, %s5
  %s8 = scalar_select 0, %s7, %s5
  // Predicated region
  $region2: #{meta_aconc.3} parent=0 // pred_check
    _
  $region3: #{meta_aconc.3} parent=0 // pred_check_branch
    %10 = sbr.rel (0) target = $region5
  $region4: #{meta_aconc.3} parent=0 // pred_region
    _
  $region5: #{meta_aconc.3} parent=0 // pred_fallthru
    _
  // Predicated region
  $region6: #{meta_aconc.3} parent=0 // pred_check
    _
  $region7: #{meta_aconc.3} parent=0 // pred_check_branch
    %12 = sbr.rel (0) target = $region9
  $region8: #{meta_aconc.3} parent=0 // pred_region
    _
  $region9: #{meta_aconc.3} parent=0 // pred_fallthru
    _
  // Predicated region
  $region10: #{meta_aconc.3} parent=0 // pred_check
    _
  $region11: #{meta_aconc.3} parent=0 // pred_check_branch
    %14 = sbr.rel (0) target = $region13
  $region12: #{meta_aconc.3} parent=0 // pred_region
    _
  $region13: #{meta_aconc.3} parent=0 // pred_fallthru
    _
  // Predicated region
  $region14: #{meta_aconc.3} parent=0 // pred_check
    _
  $region15: #{meta_aconc.3} parent=0 // pred_check_branch
    %16 = sbr.rel (0) target = $region17
  $region16: #{meta_aconc.3} parent=0 // pred_region
    _
  $region17: #{meta_aconc.3} parent=0 // pred_fallthru
    _
  %v17 = vld [vmem:[%s0] sm:$0xff]
  %v18 = vld [vmem:[%s0 + $0x8] sm:$0xff]
  %v19 = vld [vmem:[%s1] sm:$0xff]
  %v20 = vld [vmem:[%s2] sm:$0xff]
  %v21 = vld [vmem:[%s3] sm:$0xff]
  %23 = vset.pattern.permute.xlu0 0
  %24 = vperm.xlu0 %23, %v19
  %v25 = vpop.permute.xlu0 %24
  %v27 = vmul.f32 %v25, %v17
  %v28 = vmul.f32 %v25, %v18
  %30 = vset.pattern.permute.xlu0 0
  %31 = vperm.xlu0 %30, %v21
  %v32 = vpop.permute.xlu0 %31
  %v34 = vmul.f32 %v32, %v27
  %v35 = vmul.f32 %v32, %v28
  %v36 = vxor.u32 %v34, 2147483648
  %v37 = vxor.u32 %v35, 2147483648
  %v38 = vmul.f32 %v36, 1.442695
  %v39 = vpow.pop %v38
  %v40 = vmul.f32 %v37, 1.442695
  %v41 = vpow.pop %v40
  %v42 = vadd.f32 %v39, 1.0
  %v43 = vadd.f32 %v41, 1.0
  %v44 = vrcp.pop %v42
  %v45 = vmul.f32 1.0, %v44
  %v46 = vrcp.pop %v43
  %v47 = vmul.f32 1.0, %v46
  %v48 = vmul.f32 %v27, %v45
  %v49 = vmul.f32 %v28, %v47
  %51 = vset.pattern.permute.xlu0 0
  %52 = vperm.xlu0 %51, %v20
  %v53 = vpop.permute.xlu0 %52
  %v55 = vmul.f32 %v53, %v17
  %v56 = vmul.f32 %v53, %v18
  %v57 = vadd.f32 %v48, %v55
  %v58 = vadd.f32 %v49, %v56
  %59 = vst [vmem:[%s4] sm:$0xff] %v57
  %60 = vst [vmem:[%s4 + $0x8] sm:$0xff] %v58
  // Predicated region
  $region18: #{meta_aconc.3} parent=0 // pred_check
    _
  $region19: #{meta_aconc.3} parent=0 // pred_check_branch
    %62 = sbr.rel (0) target = $region21
  $region20: #{meta_aconc.3} parent=0 // pred_region
    _
  $region21: #{meta_aconc.3} parent=0 // pred_fallthru
    _
  // Predicated region
  $region22: #{meta_aconc.3} parent=0 // pred_check
    _
  $region23: #{meta_aconc.3} parent=0 // pred_check_branch
    %64 = sbr.rel (0) target = $region25
  $region24: #{meta_aconc.3} parent=0 // pred_region
    _
  $region25: #{meta_aconc.3} parent=0 // pred_fallthru
    _

</llo_original>
